<compile_context>
chip_gen: v6e
topology: v6e:2x2x1
jax: 0.10.0
libtpu: 0.0.40
codegen_flags: <defaults>
</compile_context>

<pallas_src>
import functools

import jax
import jax.numpy as jnp
from jax.experimental import pallas as pl
from jax.experimental.pallas import tpu as pltpu


def _proj_kernel(x_ref, w_ref, b_ref, o_ref, acc_ref):
    # x_ref: (TM, TK) bf16, w_ref: (TK, TN) bf16, b_ref: (1, TN) f32
    # o_ref: (TM, TN) f32 out, acc_ref: (TM, TN) f32 scratch (lives across K).
    k = pl.program_id(2)

    @pl.when(k == 0)
    def _():
        acc_ref[...] = jnp.zeros_like(acc_ref)

    acc_ref[...] += jnp.dot(x_ref[...], w_ref[...],
                            preferred_element_type=jnp.float32)

    @pl.when(k == pl.num_programs(2) - 1)
    def _():
        o_ref[...] = (acc_ref[...] + b_ref[...]).astype(o_ref.dtype)


def _round_up(x, m):
    return (x + m - 1) // m * m


def patch_embed_proj(patches, weight, bias, *, tm_target=512, tk_target=2048):
    """patches: (M, K) f32; weight: (K, E) f32; bias: (E,) f32 -> (M, E) f32."""
    M, K = patches.shape
    Kw, E = weight.shape
    assert K == Kw

    # --- lane alignment: pad the contraction dim to a multiple of 128
    # (zero columns do not change the result).
    K_p = max(128, _round_up(K, 128))
    if K_p <= tk_target:
        TK = K_p
    else:
        TK = tk_target
        K_p = _round_up(K_p, TK)

    # --- M tiling (rows = B * num_patches * inner * inner).
    TM = M if M <= tm_target else tm_target
    M_p = _round_up(M, TM)

    # --- N tiling: keep the output lane dim dense; prefer 128-multiples.
    if E % 512 == 0:
        TN = 512
    elif E % 256 == 0:
        TN = 256
    elif E % 128 == 0:
        TN = 128
    else:
        TN = E  # block equals full array dim (small embed dims)

    xp = patches
    if (M_p, K_p) != (M, K):
        xp = jnp.pad(xp, ((0, M_p - M), (0, K_p - K)))
    w = weight
    if K_p != K:
        w = jnp.pad(w, ((0, K_p - K), (0, 0)))

    # bf16 inputs for MXU throughput (f32 accumulate, f32 bias, f32 output).
    xp = xp.astype(jnp.bfloat16)
    w = w.astype(jnp.bfloat16)
    b2 = bias.reshape(1, E).astype(jnp.float32)

    grid = (M_p // TM, E // TN, K_p // TK)

    cost = pl.CostEstimate(
        flops=2 * M_p * K_p * E,
        transcendentals=0,
        bytes_accessed=2 * (M_p * K_p + K_p * E) + 4 * (M_p * E + E),
    )

    out = pl.pallas_call(
        _proj_kernel,
        out_shape=jax.ShapeDtypeStruct((M_p, E), jnp.float32),
        grid_spec=pltpu.PrefetchScalarGridSpec(
            num_scalar_prefetch=0,
            grid=grid,
            in_specs=[
                pl.BlockSpec((TM, TK), lambda i, j, k: (i, k)),
                pl.BlockSpec((TK, TN), lambda i, j, k: (k, j)),
                pl.BlockSpec((1, TN), lambda i, j, k: (0, j)),
            ],
            out_specs=pl.BlockSpec((TM, TN), lambda i, j, k: (i, j)),
            scratch_shapes=[pltpu.VMEM((TM, TN), jnp.float32)],
        ),
        compiler_params=pltpu.CompilerParams(
            dimension_semantics=("parallel", "parallel", "arbitrary")),
        cost_estimate=cost,
    )(xp, w, b2)

    if M_p != M:
        out = out[:M]
    return out


def patch_embed_forward(x, conv_weight, conv_bias, patch_size, inner_patches):
    """Full PatchEmbed.forward.

    x           : (B, C, H, W)  -- NCHW, same as PyTorch
    conv_weight : (embed_dim, C, kh, kw) with kh = kw = patch_size // inner_patches
    conv_bias   : (embed_dim,)
    returns     : (B, num_patches, inner_patches, inner_patches, embed_dim)
    """
    B, C, H, W = x.shape
    E, _, kh, kw = conv_weight.shape
    pr0, pr1 = H // patch_size, W // patch_size
    num_patches = pr0 * pr1

    # Patchify NCHW so rows land directly in the module's output ordering
    # (b, p0, p1, i0, i1): H decomposes as (pr0, inner, kh), W as (pr1, inner, kw).
    # This folds the PyTorch post-conv permute into the pre-kernel reshape so
    # the kernel result only needs a free row-major reshape afterwards.
    xp = x.reshape(B, C, pr0, inner_patches, kh, pr1, inner_patches, kw)
    xp = jnp.transpose(xp, (0, 2, 5, 3, 6, 1, 4, 7))
    xp = xp.reshape(B * num_patches * inner_patches * inner_patches, C * kh * kw)

    # conv weight (E, C, kh, kw) -> (C*kh*kw, E) so the matmul matches the conv.
    w = conv_weight.reshape(E, C * kh * kw).T

    y = patch_embed_proj(xp, w, conv_bias)          # (M, E) f32

    return y.reshape(B, num_patches, inner_patches, inner_patches, E)


def _reference(x, conv_weight, conv_bias, patch_size, inner_patches):
    """Pure-JAX reference using lax.conv (mirrors nn.Conv2d semantics)."""
    B, C, H, W = x.shape
    E, _, kh, kw = conv_weight.shape
    pr0, pr1 = H // patch_size, W // patch_size
    num_patches = pr0 * pr1
    y = jax.lax.conv_general_dilated(
        x, conv_weight, window_strides=(kh, kw), padding="VALID",
        dimension_numbers=("NCHW", "OIHW", "NCHW"))
    y = y + conv_bias.reshape(1, E, 1, 1)
    y = y.reshape(B, E, pr0, inner_patches, pr1, inner_patches)
    y = jnp.transpose(y, (0, 2, 4, 3, 5, 1))
    return y.reshape(B, num_patches, inner_patches, inner_patches, E)


if __name__ == "__main__":
    # Small, consistent shapes: img=16, patch_size=8, inner_patches=4
    # => conv kernel/stride = 2, patches_resolution = 2x2, num_patches = 4.
    B, C, H, W = 2, 4, 16, 16
    patch_size = 8
    inner_patches = 4
    embed_dim = 32
    conv_k = patch_size // inner_patches  # 2

    key = jax.random.PRNGKey(0)
    kx, kw_, kb = jax.random.split(key, 3)
    x = jax.random.normal(kx, (B, C, H, W), dtype=jnp.float32)
    conv_weight = jax.random.normal(kw_, (embed_dim, C, conv_k, conv_k),
                                    dtype=jnp.float32) * 0.05
    conv_bias = jax.random.normal(kb, (embed_dim,), dtype=jnp.float32) * 0.05

    fwd = jax.jit(functools.partial(patch_embed_forward,
                                    patch_size=patch_size,
                                    inner_patches=inner_patches))
    out = jax.block_until_ready(fwd(x, conv_weight, conv_bias))

    ref = _reference(x, conv_weight, conv_bias, patch_size, inner_patches)
    expect_shape = (B, (H // patch_size) * (W // patch_size),
                    inner_patches, inner_patches, embed_dim)
    assert out.shape == expect_shape, out.shape
    # bf16 MXU inputs (f32 accumulate) -> slightly looser tolerance than pure f32.
    assert jnp.allclose(out, ref, atol=2e-2, rtol=2e-2), "mismatch vs reference"

    print("KERNEL_OK")
</pallas_src>

<mosaic_0001>
module attributes {stable_mosaic.version = 11 : i64} {
  func.func @_proj_kernel(%arg0: i32, %arg1: i32, %arg2: i32, %arg3: memref<128x128xbf16, #tpu.memory_space<vmem>>, %arg4: memref<128x32xbf16, #tpu.memory_space<vmem>>, %arg5: memref<1x32xf32, #tpu.memory_space<vmem>>, %arg6: memref<128x32xf32, #tpu.memory_space<vmem>>, %arg7: memref<128x32xf32, #tpu.memory_space<vmem>>) attributes {dimension_semantics = [#tpu.dimension_semantics<parallel>, #tpu.dimension_semantics<parallel>, #tpu.dimension_semantics<arbitrary>], iteration_bounds = array<i64: 1, 1, 1>, scalar_prefetch = 0 : i64, scratch_operands = 1 : i64, tpu.core_type = #tpu.core_type<tc>, window_params = [{transform_indices = @transform_0, window_bounds = array<i64: 128, 128>}, {transform_indices = @transform_1, window_bounds = array<i64: 128, 32>}, {transform_indices = @transform_2, window_bounds = array<i64: 1, 32>}, {transform_indices = @transform_3, window_bounds = array<i64: 128, 32>}]} {
    %c0_i32 = arith.constant 0 : i32
    %0 = arith.cmpi eq, %arg2, %c0_i32 : i32
    %1 = arith.extui %0 : i1 to i32
    %c0_i32_0 = arith.constant 0 : i32
    %2 = arith.cmpi ne, %1, %c0_i32_0 : i32
    scf.if %2 {
      %cst_10 = arith.constant 0.000000e+00 : f32
      %12 = vector.broadcast %cst_10 : f32 to vector<128x32xf32>
      %c0_11 = arith.constant 0 : index
      %c0_12 = arith.constant 0 : index
      %13 = vector.load %arg7[%c0_11, %c0_12] : memref<128x32xf32, #tpu.memory_space<vmem>>, vector<128x32xf32>
      tpu.vector_store %arg7[%c0_11, %c0_12], %12 {strides = array<i32>} : memref<128x32xf32, #tpu.memory_space<vmem>>, vector<128x32xf32>,
    } else {
    }
    %c0 = arith.constant 0 : index
    %c0_1 = arith.constant 0 : index
    %3 = vector.load %arg7[%c0, %c0_1] : memref<128x32xf32, #tpu.memory_space<vmem>>, vector<128x32xf32>
    %c0_2 = arith.constant 0 : index
    %c0_3 = arith.constant 0 : index
    %4 = vector.load %arg3[%c0_2, %c0_3] : memref<128x128xbf16, #tpu.memory_space<vmem>>, vector<128x128xbf16>
    %c0_4 = arith.constant 0 : index
    %c0_5 = arith.constant 0 : index
    %5 = vector.load %arg4[%c0_4, %c0_5] : memref<128x32xbf16, #tpu.memory_space<vmem>>, vector<128x32xbf16>
    %cst = arith.constant dense<0.000000e+00> : vector<128x32xf32>
    %6 = tpu.matmul %4, %5, %cst {dimension_numbers = #tpu.dot_dimension_numbers<[1], [0], [0], [1], [0, 0, 1, 1], [], []>} : vector<128x128xbf16>, vector<128x32xbf16>, vector<128x32xf32> -> vector<128x32xf32>
    %7 = arith.addf %3, %6 : vector<128x32xf32>
    %c0_6 = arith.constant 0 : index
    %c0_7 = arith.constant 0 : index
    %8 = vector.load %arg7[%c0_6, %c0_7] : memref<128x32xf32, #tpu.memory_space<vmem>>, vector<128x32xf32>
    tpu.vector_store %arg7[%c0_6, %c0_7], %7 {strides = array<i32>} : memref<128x32xf32, #tpu.memory_space<vmem>>, vector<128x32xf32>,
    %c0_i32_8 = arith.constant 0 : i32
    %9 = arith.cmpi eq, %arg2, %c0_i32_8 : i32
    %10 = arith.extui %9 : i1 to i32
    %c0_i32_9 = arith.constant 0 : i32
    %11 = arith.cmpi ne, %10, %c0_i32_9 : i32
    scf.if %11 {
      %c0_10 = arith.constant 0 : index
      %c0_11 = arith.constant 0 : index
      %12 = vector.load %arg7[%c0_10, %c0_11] : memref<128x32xf32, #tpu.memory_space<vmem>>, vector<128x32xf32>
      %c0_12 = arith.constant 0 : index
      %c0_13 = arith.constant 0 : index
      %13 = vector.load %arg5[%c0_12, %c0_13] : memref<1x32xf32, #tpu.memory_space<vmem>>, vector<1x32xf32>
      %14 = vector.broadcast %13 : vector<1x32xf32> to vector<128x32xf32>
      %15 = arith.addf %12, %14 : vector<128x32xf32>
      %c0_14 = arith.constant 0 : index
      %c0_15 = arith.constant 0 : index
      %16 = vector.load %arg6[%c0_14, %c0_15] : memref<128x32xf32, #tpu.memory_space<vmem>>, vector<128x32xf32>
      tpu.vector_store %arg6[%c0_14, %c0_15], %15 {strides = array<i32>} : memref<128x32xf32, #tpu.memory_space<vmem>>, vector<128x32xf32>,
    } else {
    }
    return
  }
  func.func @transform_0(%arg0: i32, %arg1: i32, %arg2: i32) -> (i32, i32) {
    %c0_i32 = arith.constant 0 : i32
    return %arg0, %arg2 : i32, i32
  }
  func.func @transform_1(%arg0: i32, %arg1: i32, %arg2: i32) -> (i32, i32) {
    %c0_i32 = arith.constant 0 : i32
    return %arg2, %arg1 : i32, i32
  }
  func.func @transform_2(%arg0: i32, %arg1: i32, %arg2: i32) -> (i32, i32) {
    %c0_i32 = arith.constant 0 : i32
    %c0_i32_0 = arith.constant 0 : i32
    return %c0_i32, %arg1 : i32, i32
  }
  func.func @transform_3(%arg0: i32, %arg1: i32, %arg2: i32) -> (i32, i32) {
    %c0_i32 = arith.constant 0 : i32
    return %arg0, %arg1 : i32, i32
  }
}

</mosaic_0001>

<llo_original>
// kernel: patch_embed_forward.1
$region0: #{patch_embed_forward.1}
  #allocation0 [shape = 'u32[]', space=smem, size = 0x4, offset = 0x4, fixed_abs, tag = 'smem constant byte address 0x4 - core index']
  #allocation1 [shape = 'u32[144,128]{1,0:T(1,128)}', space=vmem, size = 0x12000, scoped, tag = 'internal scratch']
  #allocation2 [shape = 'f32[128,32]{1,0:T(8,128)}', space=vmem, size = 0x10000, scoped, tag = 'scratch operand']
  %s0 = inlined_call_operand.vmem [shape: bf16[128,128], index: 0, kind: input, shape index: {}]
  %s1 = inlined_call_operand.vmem [shape: bf16[128,32], index: 1, kind: input, shape index: {}]
  %s2 = inlined_call_operand.vmem [shape: f32[1,32], index: 2, kind: input, shape index: {}]
  %s3 = inlined_call_operand.hbm [shape: f32[128,32], index: 3, kind: output, shape index: {}]
  %s4 = sld [smem:[#allocation0]]
  $region30: #{patch_embed_forward.1} parent=0
    _
  %s6 = ssub.s32 1, %s4
  %s7 = scalar_select 0, %s6, %s4
  $region1: #{patch_embed_forward.1} parent=0
    #allocation3 [shape = 'u8[65536]{0}', space=vmem, size = 0x10000, scoped, tag = 'output window, operand 0, single buffered']
    #allocation4 [shape = 's32[1]{0}', space=sflag, size = 0x4, scoped, tag = 'scoped memory for patch_embed_forward.1']
    %8 = vsyncpa [#allocation4], 0
    // Predicated region
    $region2: #{patch_embed_forward.1} parent=1 // pred_check
      _
    $region3: #{patch_embed_forward.1} parent=1 // pred_check_branch
      %10 = sbr.rel (0) target = $region5
    $region4: #{patch_embed_forward.1} parent=1 // pred_region
      _
    $region5: #{patch_embed_forward.1} parent=1 // pred_fallthru
      _
    // Predicated region
    $region6: #{patch_embed_forward.1} parent=1 // pred_check
      _
    $region7: #{patch_embed_forward.1} parent=1 // pred_check_branch
      %12 = sbr.rel (0) target = $region9
    $region8: #{patch_embed_forward.1} parent=1 // pred_region
      _
    $region9: #{patch_embed_forward.1} parent=1 // pred_fallthru
      _
    // Predicated region
    $region10: #{patch_embed_forward.1} parent=1 // pred_check
      _
    $region11: #{patch_embed_forward.1} parent=1 // pred_check_branch
      %14 = sbr.rel (0) target = $region13
    $region12: #{patch_embed_forward.1} parent=1 // pred_region
      _
    $region13: #{patch_embed_forward.1} parent=1 // pred_fallthru
      _
    %p16 = scmp.eq.s32.totalorder 0, 0
    // Predicated region
    $region14: #{patch_embed_forward.1} parent=1 // pred_check
      %p17 = pneg %p16
    $region15: #{patch_embed_forward.1} parent=1 // pred_check_branch
      %19 = sbr.rel (%p17) target = $region17
    $region16: #{patch_embed_forward.1} parent=1 // pred_region
      %vm20 = vcmask 261120
      %21 = vst.msk [vmem:[#allocation2] sm:$0xff] %vm20, 0.0
      %22 = vst.msk [vmem:[#allocation2 + $0x8] sm:$0xff] %vm20, 0.0
      %23 = vst.msk [vmem:[#allocation2 + $0x10] sm:$0xff] %vm20, 0.0
      %24 = vst.msk [vmem:[#allocation2 + $0x18] sm:$0xff] %vm20, 0.0
      %25 = vst.msk [vmem:[#allocation2 + $0x20] sm:$0xff] %vm20, 0.0
      %26 = vst.msk [vmem:[#allocation2 + $0x28] sm:$0xff] %vm20, 0.0
      %27 = vst.msk [vmem:[#allocation2 + $0x30] sm:$0xff] %vm20, 0.0
      %28 = vst.msk [vmem:[#allocation2 + $0x38] sm:$0xff] %vm20, 0.0
      %29 = vst.msk [vmem:[#allocation2 + $0x40] sm:$0xff] %vm20, 0.0
      %30 = vst.msk [vmem:[#allocation2 + $0x48] sm:$0xff] %vm20, 0.0
      %31 = vst.msk [vmem:[#allocation2 + $0x50] sm:$0xff] %vm20, 0.0
      %32 = vst.msk [vmem:[#allocation2 + $0x58] sm:$0xff] %vm20, 0.0
      %33 = vst.msk [vmem:[#allocation2 + $0x60] sm:$0xff] %vm20, 0.0
      %34 = vst.msk [vmem:[#allocation2 + $0x68] sm:$0xff] %vm20, 0.0
      %35 = vst.msk [vmem:[#allocation2 + $0x70] sm:$0xff] %vm20, 0.0
      %36 = vst.msk [vmem:[#allocation2 + $0x78] sm:$0xff] %vm20, 0.0
    $region17: #{patch_embed_forward.1} parent=1 // pred_fallthru
      _
    %v37 = vld [vmem:[#allocation2] sm:$0xff]
    %v38 = vld [vmem:[#allocation2 + $0x8] sm:$0xff]
    %v39 = vld [vmem:[#allocation2 + $0x10] sm:$0xff]
    %v40 = vld [vmem:[#allocation2 + $0x18] sm:$0xff]
    %v41 = vld [vmem:[#allocation2 + $0x20] sm:$0xff]
    %v42 = vld [vmem:[#allocation2 + $0x28] sm:$0xff]
    %v43 = vld [vmem:[#allocation2 + $0x30] sm:$0xff]
    %v44 = vld [vmem:[#allocation2 + $0x38] sm:$0xff]
    %v45 = vld [vmem:[#allocation2 + $0x40] sm:$0xff]
    %v46 = vld [vmem:[#allocation2 + $0x48] sm:$0xff]
    %v47 = vld [vmem:[#allocation2 + $0x50] sm:$0xff]
    %v48 = vld [vmem:[#allocation2 + $0x58] sm:$0xff]
    %v49 = vld [vmem:[#allocation2 + $0x60] sm:$0xff]
    %v50 = vld [vmem:[#allocation2 + $0x68] sm:$0xff]
    %v51 = vld [vmem:[#allocation2 + $0x70] sm:$0xff]
    %v52 = vld [vmem:[#allocation2 + $0x78] sm:$0xff]
    %v53 = vld [vmem:[%s0] sm:$0xf]
    %v54 = vld [vmem:[%s0 + $0x4] sm:$0xf]
    %v55 = vld [vmem:[%s0 + $0x8] sm:$0xf]
    %v56 = vld [vmem:[%s0 + $0xc] sm:$0xf]
    %v57 = vld [vmem:[%s0 + $0x10] sm:$0xf]
    %v58 = vld [vmem:[%s0 + $0x14] sm:$0xf]
    %v59 = vld [vmem:[%s0 + $0x18] sm:$0xf]
    %v60 = vld [vmem:[%s0 + $0x1c] sm:$0xf]
    %v61 = vld [vmem:[%s0 + $0x20] sm:$0xf]
    %v62 = vld [vmem:[%s0 + $0x24] sm:$0xf]
    %v63 = vld [vmem:[%s0 + $0x28] sm:$0xf]
    %v64 = vld [vmem:[%s0 + $0x2c] sm:$0xf]
    %v65 = vld [vmem:[%s0 + $0x30] sm:$0xf]
    %v66 = vld [vmem:[%s0 + $0x34] sm:$0xf]
    %v67 = vld [vmem:[%s0 + $0x38] sm:$0xf]
    %v68 = vld [vmem:[%s0 + $0x3c] sm:$0xf]
    %v69 = vld [vmem:[%s1] sm:$0xf]
    %v70 = vld [vmem:[%s1 + $0x4] sm:$0xf]
    %v71 = vld [vmem:[%s1 + $0x8] sm:$0xf]
    %v72 = vld [vmem:[%s1 + $0xc] sm:$0xf]
    %v73 = vld [vmem:[%s1 + $0x10] sm:$0xf]
    %v74 = vld [vmem:[%s1 + $0x14] sm:$0xf]
    %v75 = vld [vmem:[%s1 + $0x18] sm:$0xf]
    %v76 = vld [vmem:[%s1 + $0x1c] sm:$0xf]
    %v77 = vld [vmem:[%s1 + $0x20] sm:$0xf]
    %v78 = vld [vmem:[%s1 + $0x24] sm:$0xf]
    %v79 = vld [vmem:[%s1 + $0x28] sm:$0xf]
    %v80 = vld [vmem:[%s1 + $0x2c] sm:$0xf]
    %v81 = vld [vmem:[%s1 + $0x30] sm:$0xf]
    %v82 = vld [vmem:[%s1 + $0x34] sm:$0xf]
    %v83 = vld [vmem:[%s1 + $0x38] sm:$0xf]
    %v84 = vld [vmem:[%s1 + $0x3c] sm:$0xf]
    %v101 = vunpack.c.l.b16 %v53
    %v102 = vunpack.c.l.b16 %v54
    %v103 = vunpack.c.l.b16 %v55
    %v104 = vunpack.c.l.b16 %v56
    %v105 = vunpack.c.l.b16 %v57
    %v106 = vunpack.c.l.b16 %v58
    %v107 = vunpack.c.l.b16 %v59
    %v108 = vunpack.c.l.b16 %v60
    %v109 = vunpack.c.l.b16 %v61
    %v110 = vunpack.c.l.b16 %v62
    %v111 = vunpack.c.l.b16 %v63
    %v112 = vunpack.c.l.b16 %v64
    %v113 = vunpack.c.l.b16 %v65
    %v114 = vunpack.c.l.b16 %v66
    %v115 = vunpack.c.l.b16 %v67
    %v116 = vunpack.c.l.b16 %v68
    %v117 = vpack.c.b16 %v102, %v101
    %v118 = vpack.c.b16 %v104, %v103
    %v119 = vpack.c.b16 %v106, %v105
    %v120 = vpack.c.b16 %v108, %v107
    %v121 = vpack.c.b16 %v110, %v109
    %v122 = vpack.c.b16 %v112, %v111
    %v123 = vpack.c.b16 %v114, %v113
    %v124 = vpack.c.b16 %v116, %v115
    %v149 = vunpack.c.l.b16 %v69
    %v150 = vunpack.c.l.b16 %v70
    %v151 = vunpack.c.l.b16 %v71
    %v152 = vunpack.c.l.b16 %v72
    %v153 = vunpack.c.l.b16 %v73
    %v154 = vunpack.c.l.b16 %v74
    %v155 = vunpack.c.l.b16 %v75
    %v156 = vunpack.c.l.b16 %v76
    %v157 = vunpack.c.l.b16 %v77
    %v158 = vunpack.c.l.b16 %v78
    %v159 = vunpack.c.l.b16 %v79
    %v160 = vunpack.c.l.b16 %v80
    %v161 = vunpack.c.l.b16 %v81
    %v162 = vunpack.c.l.b16 %v82
    %v163 = vunpack.c.l.b16 %v83
    %v164 = vunpack.c.l.b16 %v84
    %v165 = vpack.c.b16 %v150, %v149
    %v166 = vpack.c.b16 %v152, %v151
    %v167 = vpack.c.b16 %v154, %v153
    %v168 = vpack.c.b16 %v156, %v155
    %v169 = vpack.c.b16 %v158, %v157
    %v170 = vpack.c.b16 %v160, %v159
    %v171 = vpack.c.b16 %v162, %v161
    %v172 = vpack.c.b16 %v164, %v163
    %181 = vmatprep.subr.bf16.mxu0 0
    %182 = vmatpush1.bf16.msra.mxu0 %v172
    %183 = vmatprep.subr.bf16.mxu0 0
    %184 = vmatpush1.bf16.msra.mxu0 %v171
    %185 = vmatprep.subr.bf16.mxu0 0
    %186 = vmatpush1.bf16.msra.mxu0 %v170
    %187 = vmatprep.subr.bf16.mxu0 0
    %188 = vmatpush1.bf16.msra.mxu0 %v169
    %189 = vmatprep.subr.bf16.mxu0 0
    %190 = vmatpush1.bf16.msra.mxu0 %v168
    %191 = vmatprep.subr.bf16.mxu0 0
    %192 = vmatpush1.bf16.msra.mxu0 %v167
    %193 = vmatprep.subr.bf16.mxu0 0
    %194 = vmatpush1.bf16.msra.mxu0 %v166
    %195 = vmatprep.subr.bf16.mxu0 0
    %196 = vmatpush1.bf16.msra.mxu0 %v165
    %197 = vmatprep.subr.bf16.mxu0 0
    %198 = vmatpush2.bf16.msra.mxu0 0
    %199 = vmatprep.subr.bf16.mxu0 0
    %200 = vmatpush2.bf16.msra.mxu0 0
    %201 = vmatprep.subr.bf16.mxu0 0
    %202 = vmatpush2.bf16.msra.mxu0 0
    %203 = vmatprep.subr.bf16.mxu0 0
    %204 = vmatpush2.bf16.msra.mxu0 0
    %205 = vmatprep.subr.bf16.mxu0 0
    %206 = vmatpush2.bf16.msra.mxu0 0
    %207 = vmatprep.subr.bf16.mxu0 0
    %208 = vmatpush2.bf16.msra.mxu0 0
    %209 = vmatprep.subr.bf16.mxu0 0
    %210 = vmatpush2.bf16.msra.mxu0 0
    %211 = vmatprep.subr.bf16.mxu0 0
    %212 = vmatpush2.bf16.msra.mxu0 0
    %213 = vmatprep.mubr.bf16.mxu0 0
    %214 = vmatmul.mubr.bf16.gmra.mxu0 %v117
    %v215 = vpop.f32.mrf.mxu0
    %v216 = vadd.f32 0.0, %v215
    %v217 = vpop.f32.mrf.mxu0
    %v218 = vpop.f32.mrf.mxu0
    %v219 = vadd.f32 0.0, %v218
    %v220 = vpop.f32.mrf.mxu0
    %221 = vmatprep.mubr.bf16.mxu0 0
    %222 = vmatmul.mubr.bf16.gmra.mxu0 %v118
    %v223 = vpop.f32.mrf.mxu0
    %v224 = vadd.f32 0.0, %v223
    %v225 = vpop.f32.mrf.mxu0
    %v226 = vpop.f32.mrf.mxu0
    %v227 = vadd.f32 0.0, %v226
    %v228 = vpop.f32.mrf.mxu0
    %229 = vmatprep.mubr.bf16.mxu0 0
    %230 = vmatmul.mubr.bf16.gmra.mxu0 %v119
    %v231 = vpop.f32.mrf.mxu0
    %v232 = vadd.f32 0.0, %v231
    %v233 = vpop.f32.mrf.mxu0
    %v234 = vpop.f32.mrf.mxu0
    %v235 = vadd.f32 0.0, %v234
    %v236 = vpop.f32.mrf.mxu0
    %237 = vmatprep.mubr.bf16.mxu0 0
    %238 = vmatmul.mubr.bf16.gmra.mxu0 %v120
    %v239 = vpop.f32.mrf.mxu0
    %v240 = vadd.f32 0.0, %v239
    %v241 = vpop.f32.mrf.mxu0
    %v242 = vpop.f32.mrf.mxu0
    %v243 = vadd.f32 0.0, %v242
    %v244 = vpop.f32.mrf.mxu0
    %245 = vmatprep.mubr.bf16.mxu0 0
    %246 = vmatmul.mubr.bf16.gmra.mxu0 %v121
    %v247 = vpop.f32.mrf.mxu0
    %v248 = vadd.f32 0.0, %v247
    %v249 = vpop.f32.mrf.mxu0
    %v250 = vpop.f32.mrf.mxu0
    %v251 = vadd.f32 0.0, %v250
    %v252 = vpop.f32.mrf.mxu0
    %253 = vmatprep.mubr.bf16.mxu0 0
    %254 = vmatmul.mubr.bf16.gmra.mxu0 %v122
    %v255 = vpop.f32.mrf.mxu0
    %v256 = vadd.f32 0.0, %v255
    %v257 = vpop.f32.mrf.mxu0
    %v258 = vpop.f32.mrf.mxu0
    %v259 = vadd.f32 0.0, %v258
    %v260 = vpop.f32.mrf.mxu0
    %261 = vmatprep.mubr.bf16.mxu0 0
    %262 = vmatmul.mubr.bf16.gmra.mxu0 %v123
    %v263 = vpop.f32.mrf.mxu0
    %v264 = vadd.f32 0.0, %v263
    %v265 = vpop.f32.mrf.mxu0
    %v266 = vpop.f32.mrf.mxu0
    %v267 = vadd.f32 0.0, %v266
    %v268 = vpop.f32.mrf.mxu0
    %269 = vmatprep.mubr.bf16.mxu0 0
    %270 = vmatmul.mubr.bf16.gmra.mxu0 %v124
    %v271 = vpop.f32.mrf.mxu0
    %v272 = vadd.f32 0.0, %v271
    %v273 = vpop.f32.mrf.mxu0
    %v274 = vpop.f32.mrf.mxu0
    %v275 = vadd.f32 0.0, %v274
    %v276 = vpop.f32.mrf.mxu0
    %277 = vdwg.mxu0
    %v278 = vadd.f32 %v37, %v216
    %v279 = vadd.f32 %v38, %v219
    %v280 = vadd.f32 %v39, %v224
    %v281 = vadd.f32 %v40, %v227
    %v282 = vadd.f32 %v41, %v232
    %v283 = vadd.f32 %v42, %v235
    %v284 = vadd.f32 %v43, %v240
    %v285 = vadd.f32 %v44, %v243
    %v286 = vadd.f32 %v45, %v248
    %v287 = vadd.f32 %v46, %v251
    %v288 = vadd.f32 %v47, %v256
    %v289 = vadd.f32 %v48, %v259
    %v290 = vadd.f32 %v49, %v264
    %v291 = vadd.f32 %v50, %v267
    %v292 = vadd.f32 %v51, %v272
    %v293 = vadd.f32 %v52, %v275
    %vm294 = vcmask 261120
    %295 = vst.msk [vmem:[#allocation2] sm:$0xff] %vm294, %v278
    %296 = vst.msk [vmem:[#allocation2 + $0x8] sm:$0xff] %vm294, %v279
    %297 = vst.msk [vmem:[#allocation2 + $0x10] sm:$0xff] %vm294, %v280
    %298 = vst.msk [vmem:[#allocation2 + $0x18] sm:$0xff] %vm294, %v281
    %299 = vst.msk [vmem:[#allocation2 + $0x20] sm:$0xff] %vm294, %v282
    %300 = vst.msk [vmem:[#allocation2 + $0x28] sm:$0xff] %vm294, %v283
    %301 = vst.msk [vmem:[#allocation2 + $0x30] sm:$0xff] %vm294, %v284
    %302 = vst.msk [vmem:[#allocation2 + $0x38] sm:$0xff] %vm294, %v285
    %303 = vst.msk [vmem:[#allocation2 + $0x40] sm:$0xff] %vm294, %v286
    %304 = vst.msk [vmem:[#allocation2 + $0x48] sm:$0xff] %vm294, %v287
    %305 = vst.msk [vmem:[#allocation2 + $0x50] sm:$0xff] %vm294, %v288
    %306 = vst.msk [vmem:[#allocation2 + $0x58] sm:$0xff] %vm294, %v289
    %307 = vst.msk [vmem:[#allocation2 + $0x60] sm:$0xff] %vm294, %v290
    %308 = vst.msk [vmem:[#allocation2 + $0x68] sm:$0xff] %vm294, %v291
    %309 = vst.msk [vmem:[#allocation2 + $0x70] sm:$0xff] %vm294, %v292
    %310 = vst.msk [vmem:[#allocation2 + $0x78] sm:$0xff] %vm294, %v293
    // Predicated region
    $region18: #{patch_embed_forward.1} parent=1 // pred_check
      %p311 = pneg %p16
    $region19: #{patch_embed_forward.1} parent=1 // pred_check_branch
      %313 = sbr.rel (%p311) target = $region21
    $region20: #{patch_embed_forward.1} parent=1 // pred_region
      %v314 = vld [vmem:[#allocation2] sm:$0xff]
      %v315 = vld [vmem:[#allocation2 + $0x8] sm:$0xff]
      %v316 = vld [vmem:[#allocation2 + $0x10] sm:$0xff]
      %v317 = vld [vmem:[#allocation2 + $0x18] sm:$0xff]
      %v318 = vld [vmem:[#allocation2 + $0x20] sm:$0xff]
      %v319 = vld [vmem:[#allocation2 + $0x28] sm:$0xff]
      %v320 = vld [vmem:[#allocation2 + $0x30] sm:$0xff]
      %v321 = vld [vmem:[#allocation2 + $0x38] sm:$0xff]
      %v322 = vld [vmem:[#allocation2 + $0x40] sm:$0xff]
      %v323 = vld [vmem:[#allocation2 + $0x48] sm:$0xff]
      %v324 = vld [vmem:[#allocation2 + $0x50] sm:$0xff]
      %v325 = vld [vmem:[#allocation2 + $0x58] sm:$0xff]
      %v326 = vld [vmem:[#allocation2 + $0x60] sm:$0xff]
      %v327 = vld [vmem:[#allocation2 + $0x68] sm:$0xff]
      %v328 = vld [vmem:[#allocation2 + $0x70] sm:$0xff]
      %v329 = vld [vmem:[#allocation2 + $0x78] sm:$0xff]
      %v330 = vld [vmem:[%s2] sm:$0x1]
      %v332 = vlaneseq
      %v333 = vshrl.u32 %v332, 7
      %v334 = vsub.s32 0, %v333
      %v335 = vrot.slane %v330, %v334
      %v337 = vadd.f32 %v314, %v335
      %v338 = vadd.f32 %v315, %v335
      %v339 = vadd.f32 %v316, %v335
      %v340 = vadd.f32 %v317, %v335
      %v341 = vadd.f32 %v318, %v335
      %v342 = vadd.f32 %v319, %v335
      %v343 = vadd.f32 %v320, %v335
      %v344 = vadd.f32 %v321, %v335
      %v345 = vadd.f32 %v322, %v335
      %v346 = vadd.f32 %v323, %v335
      %v347 = vadd.f32 %v324, %v335
      %v348 = vadd.f32 %v325, %v335
      %v349 = vadd.f32 %v326, %v335
      %v350 = vadd.f32 %v327, %v335
      %v351 = vadd.f32 %v328, %v335
      %v352 = vadd.f32 %v329, %v335
      %353 = vst.msk [vmem:[#allocation3] sm:$0xff] %vm294, %v337
      %354 = vst.msk [vmem:[#allocation3 + $0x8] sm:$0xff] %vm294, %v338
      %355 = vst.msk [vmem:[#allocation3 + $0x10] sm:$0xff] %vm294, %v339
      %356 = vst.msk [vmem:[#allocation3 + $0x18] sm:$0xff] %vm294, %v340
      %357 = vst.msk [vmem:[#allocation3 + $0x20] sm:$0xff] %vm294, %v341
      %358 = vst.msk [vmem:[#allocation3 + $0x28] sm:$0xff] %vm294, %v342
      %359 = vst.msk [vmem:[#allocation3 + $0x30] sm:$0xff] %vm294, %v343
      %360 = vst.msk [vmem:[#allocation3 + $0x38] sm:$0xff] %vm294, %v344
      %361 = vst.msk [vmem:[#allocation3 + $0x40] sm:$0xff] %vm294, %v345
      %362 = vst.msk [vmem:[#allocation3 + $0x48] sm:$0xff] %vm294, %v346
      %363 = vst.msk [vmem:[#allocation3 + $0x50] sm:$0xff] %vm294, %v347
      %364 = vst.msk [vmem:[#allocation3 + $0x58] sm:$0xff] %vm294, %v348
      %365 = vst.msk [vmem:[#allocation3 + $0x60] sm:$0xff] %vm294, %v349
      %366 = vst.msk [vmem:[#allocation3 + $0x68] sm:$0xff] %vm294, %v350
      %367 = vst.msk [vmem:[#allocation3 + $0x70] sm:$0xff] %vm294, %v351
      %368 = vst.msk [vmem:[#allocation3 + $0x78] sm:$0xff] %vm294, %v352
    $region21: #{patch_embed_forward.1} parent=1 // pred_fallthru
      _
    // Predicated region
    $region22: #{patch_embed_forward.1} parent=1 // pred_check
      _
    $region23: #{patch_embed_forward.1} parent=1 // pred_check_branch
      %370 = sbr.rel (0) target = $region25
    $region24: #{patch_embed_forward.1} parent=1 // pred_region
      %s372 = ssub.s32 2048, 2048
      %373 = vsyncadd [#allocation4], %s372
      %s374 = sshll.u32 [#allocation3], 4
      %s375 = int_to_ptr.vmem [resolvable:$true] %s374
      %380 = dma.vmem_to_hbm [thread:$0]  %s375, 2048, %s3, [#allocation4], 128, 128, 8
    $region25: #{patch_embed_forward.1} parent=1 // pred_fallthru
      _
    // Predicated region
    $region26: #{patch_embed_forward.1} parent=1 // pred_check
      _
    $region27: #{patch_embed_forward.1} parent=1 // pred_check_branch
      %382 = sbr.rel (0) target = $region29
    $region28: #{patch_embed_forward.1} parent=1 // pred_region
      %383 = dma.done [#allocation4], 2048
    $region29: #{patch_embed_forward.1} parent=1 // pred_fallthru
      _
    %384 = vsyncpa [#allocation4], 1

</llo_original>
